<compile_context>
chip_gen: v7x
topology: tpu7x:2x2x1
jax: 0.10.0
libtpu: 0.0.40
codegen_flags: <defaults>
</compile_context>

<pallas_src>
import functools

import jax
import jax.numpy as jnp
from jax.experimental import pallas as pl
from jax.experimental.pallas import tpu as pltpu

LANE = 128
SUBLANE = 8


def _cdiv(a, b):
    return -(-a // b)


def _round_up(n, m):
    return _cdiv(n, m) * m


def _pad2(a, rows, cols):
    r, c = a.shape
    return jnp.pad(a, ((0, rows - r), (0, cols - c)))


# ---------------------------------------------------------------------------
# Fused kernel: whole forward pass for one batch tile.
#   refs layout: x | (w, b) * (num_hidden + 1) | w2, b2 | pen_out, out
# Weights are bf16 (MXU-native), biases f32; matmuls accumulate in f32.
# ---------------------------------------------------------------------------
def _grownet_fused_kernel(*refs, num_hidden):
    x_ref = refs[0]
    pen_ref, out_ref = refs[-2], refs[-1]
    it = iter(refs[1:-2])

    h = x_ref[...]                                   # f32 (b_tile, dim_in_pad)

    # part1: (Linear + ReLU) x (num_hidden + 1); activation never leaves vregs.
    for _ in range(num_hidden + 1):
        w = next(it)[...]                            # bf16 (K, hidden_pad)
        b = next(it)[...]                            # f32  (1, hidden_pad)
        acc = jnp.dot(h.astype(jnp.bfloat16), w,
                      preferred_element_type=jnp.float32)
        h = jnp.maximum(acc + b, 0.0)

    pen_ref[...] = h.astype(pen_ref.dtype)

    # part2: Linear + Sigmoid (output lane-padded to 128; wrapper slices to 3).
    w2 = next(it)[...]
    b2 = next(it)[...]
    y = jnp.dot(h.astype(jnp.bfloat16), w2,
                preferred_element_type=jnp.float32) + b2
    out_ref[...] = jax.nn.sigmoid(y).astype(out_ref.dtype)


# ---------------------------------------------------------------------------
# Parameter construction (deterministic, mimics nn.Linear default init range).
# Weights stored as (in_features, out_features) so y = x @ W + b.
# ---------------------------------------------------------------------------
def _init_linear(key, fan_in, fan_out, dtype=jnp.float32):
    kw, kb = jax.random.split(key)
    bound = 1.0 / jnp.sqrt(jnp.asarray(fan_in, dtype))
    w = jax.random.uniform(kw, (fan_in, fan_out), dtype, -bound, bound)
    b = jax.random.uniform(kb, (1, fan_out), dtype, -bound, bound)
    return w, b


def init_relu_grownet_params(key, dim_in, hidden_size, hidden_layers):
    params = {"part1": [], "part2": None}
    key, sub = jax.random.split(key)
    params["part1"].append(_init_linear(sub, dim_in, hidden_size))
    for _ in range(hidden_layers):
        key, sub = jax.random.split(key)
        params["part1"].append(_init_linear(sub, hidden_size, hidden_size))
    key, sub = jax.random.split(key)
    params["part2"] = _init_linear(sub, hidden_size, 3)
    return params


# ---------------------------------------------------------------------------
# Factory: pad / cast params ONCE, return a jitted forward == module.forward.
# ---------------------------------------------------------------------------
def make_relu_grownet_forward(params):
    dim_in = params["part1"][0][0].shape[0]
    hidden = params["part1"][0][0].shape[1]
    out_dim = params["part2"][0].shape[1]
    num_hidden = len(params["part1"]) - 1

    dim_in_pad = _round_up(dim_in, SUBLANE)
    hidden_pad = _round_up(hidden, LANE)
    out_pad = _round_up(out_dim, LANE)

    # Pre-pad + pre-cast weights/biases once (reused across many calls).
    weight_args = []
    w0, b0 = params["part1"][0]
    weight_args.append(_pad2(w0, dim_in_pad, hidden_pad).astype(jnp.bfloat16))
    weight_args.append(_pad2(b0, 1, hidden_pad).astype(jnp.float32))
    for w, b in params["part1"][1:]:
        weight_args.append(_pad2(w, hidden_pad, hidden_pad).astype(jnp.bfloat16))
        weight_args.append(_pad2(b, 1, hidden_pad).astype(jnp.float32))
    w2, b2 = params["part2"]
    weight_args.append(_pad2(w2, hidden_pad, out_pad).astype(jnp.bfloat16))
    weight_args.append(_pad2(b2, 1, out_pad).astype(jnp.float32))
    weight_args = tuple(weight_args)
    weight_bytes = sum(int(a.size) * a.dtype.itemsize for a in weight_args)

    kernel = functools.partial(_grownet_fused_kernel, num_hidden=num_hidden)

    def forward(x, prev_penultimate=None):
        x = x.astype(jnp.float32)
        if prev_penultimate is not None:
            x = jnp.concatenate([x, prev_penultimate.astype(jnp.float32)],
                                axis=1)
        assert x.shape[1] == dim_in, "input width mismatch with params"
        B = x.shape[0]

        # ---- batch tiling -------------------------------------------------
        #  * tiles are multiples of 8 sublanes, capped at 512 rows
        #  * for B >= 128 keep >= 2 grid steps so v7x's two TensorCores both
        #    get work (the batch axis is marked "parallel")
        cap = 512
        if B < 128:
            n_tiles = 1
        else:
            n_tiles = max(2, _cdiv(B, cap))
        b_tile = min(cap, _round_up(_cdiv(B, n_tiles), SUBLANE))
        b_pad = _round_up(B, b_tile)
        grid = (b_pad // b_tile,)

        # Row-pad only; feature dim stays narrow (rounded to 8, not 128).
        x_p = jnp.pad(x, ((0, b_pad - B), (0, dim_in_pad - dim_in)))

        in_specs = [pl.BlockSpec((b_tile, dim_in_pad), lambda i: (i, 0))]
        for arr in weight_args:                      # VMEM-resident params
            in_specs.append(pl.BlockSpec(arr.shape, lambda i: (0, 0)))

        out_shape = (
            jax.ShapeDtypeStruct((b_pad, hidden_pad), jnp.float32),
            jax.ShapeDtypeStruct((b_pad, out_pad), jnp.float32),
        )
        out_specs = (
            pl.BlockSpec((b_tile, hidden_pad), lambda i: (i, 0)),
            pl.BlockSpec((b_tile, out_pad), lambda i: (i, 0)),
        )

        flops = 2 * b_pad * (dim_in_pad * hidden_pad
                             + num_hidden * hidden_pad * hidden_pad
                             + hidden_pad * out_pad)
        bytes_accessed = (b_pad * dim_in_pad * 4
                          + weight_bytes
                          + b_pad * (hidden_pad + out_pad) * 4)
        cost = pl.CostEstimate(flops=flops,
                               transcendentals=b_pad * out_pad,
                               bytes_accessed=bytes_accessed)

        pen_p, out_p = pl.pallas_call(
            kernel,
            out_shape=out_shape,
            grid=grid,
            in_specs=in_specs,
            out_specs=out_specs,
            compiler_params=pltpu.CompilerParams(
                dimension_semantics=("parallel",)),
            cost_estimate=cost,
        )(x_p, *weight_args)

        # Slice padding back off (layout plumbing only). Padded hidden lanes
        # are exactly zero, so a caller chaining GrowNet stages could keep
        # pen_p in its padded layout instead of re-slicing.
        return pen_p[:B, :hidden], out_p[:B, :out_dim]

    return jax.jit(forward)


# ---------------------------------------------------------------------------
def _reference_forward(params, x, prev_penultimate=None,
                       matmul_dtype=jnp.float32):
    """Pure-jnp reference (optionally mimicking the bf16 MXU path)."""
    x = x.astype(jnp.float32)
    if prev_penultimate is not None:
        x = jnp.concatenate([x, prev_penultimate.astype(jnp.float32)], axis=1)
    h = x
    for w, b in params["part1"]:
        acc = jnp.dot(h.astype(matmul_dtype), w.astype(matmul_dtype),
                      preferred_element_type=jnp.float32)
        h = jnp.maximum(acc + b, 0.0)
    w2, b2 = params["part2"]
    y = jnp.dot(h.astype(matmul_dtype), w2.astype(matmul_dtype),
                preferred_element_type=jnp.float32) + b2
    return h, jax.nn.sigmoid(y)


def _check(params, fwd, x, prev):
    pen, out = fwd(x, prev) if prev is not None else fwd(x)
    pen = jax.block_until_ready(pen)
    out = jax.block_until_ready(out)

    B = x.shape[0]
    hidden = params["part1"][0][0].shape[1]
    assert pen.shape == (B, hidden)
    assert out.shape == (B, 3)

    # Loose check vs. exact f32 reference (bf16 MXU path is used in-kernel).
    rp, ro = _reference_forward(params, x, prev, matmul_dtype=jnp.float32)
    assert jnp.allclose(pen, rp, atol=5e-2, rtol=5e-2)
    assert jnp.allclose(out, ro, atol=5e-2, rtol=5e-2)

    # Tighter check vs. a reference that mimics the bf16 matmul / f32-acc path.
    rp16, ro16 = _reference_forward(params, x, prev, matmul_dtype=jnp.bfloat16)
    assert jnp.allclose(pen, rp16, atol=2e-3, rtol=2e-3)
    assert jnp.allclose(out, ro16, atol=2e-3, rtol=2e-3)


if __name__ == "__main__":
    input_size = 16
    penultimate_size = 32        # hidden_size
    num_hidden_layers = 2
    batch = 8

    key = jax.random.PRNGKey(0)
    k_params, k_x, k_prev, k_params0, k_x0, k_big = jax.random.split(key, 6)

    # --- stage > 0 model: dim_in = input_size + penultimate_size -------------
    dim_in = input_size + penultimate_size
    params = init_relu_grownet_params(
        k_params, dim_in, penultimate_size, num_hidden_layers)
    fwd = make_relu_grownet_forward(params)

    x = jax.random.normal(k_x, (batch, input_size), jnp.float32)
    prev = jax.random.normal(k_prev, (batch, penultimate_size), jnp.float32)
    _check(params, fwd, x, prev)

    # --- stage 0 model: no prev_penultimate ----------------------------------
    params0 = init_relu_grownet_params(
        k_params0, input_size, penultimate_size, num_hidden_layers)
    fwd0 = make_relu_grownet_forward(params0)
    x0 = jax.random.normal(k_x0, (batch, input_size), jnp.float32)
    _check(params0, fwd0, x0, None)

    # --- larger batch: exercises the 2-step "parallel" grid path -------------
    xb = jax.random.normal(k_big, (256, input_size), jnp.float32)
    prevb = jax.random.normal(k_prev, (256, penultimate_size), jnp.float32)
    _check(params, fwd, xb, prevb)

    print("KERNEL_OK")
</pallas_src>

<mosaic_0001>
module attributes {stable_mosaic.version = 11 : i64} {
  func.func @_grownet_fused_kernel(%arg0: i32, %arg1: memref<8x48xf32, #tpu.memory_space<vmem>>, %arg2: memref<48x128xbf16, #tpu.memory_space<vmem>>, %arg3: memref<1x128xf32, #tpu.memory_space<vmem>>, %arg4: memref<128x128xbf16, #tpu.memory_space<vmem>>, %arg5: memref<1x128xf32, #tpu.memory_space<vmem>>, %arg6: memref<128x128xbf16, #tpu.memory_space<vmem>>, %arg7: memref<1x128xf32, #tpu.memory_space<vmem>>, %arg8: memref<128x128xbf16, #tpu.memory_space<vmem>>, %arg9: memref<1x128xf32, #tpu.memory_space<vmem>>, %arg10: memref<8x128xf32, #tpu.memory_space<vmem>>, %arg11: memref<8x128xf32, #tpu.memory_space<vmem>>) attributes {dimension_semantics = [#tpu.dimension_semantics<parallel>], iteration_bounds = array<i64: 1>, scalar_prefetch = 0 : i64, scratch_operands = 0 : i64, tpu.core_type = #tpu.core_type<tc>, window_params = [{transform_indices = @transform_0, window_bounds = array<i64: 8, 48>}, {pipeline_mode = #tpu.pipeline_mode<synchronous>, transform_indices = @transform_1, window_bounds = array<i64: 48, 128>}, {pipeline_mode = #tpu.pipeline_mode<synchronous>, transform_indices = @transform_2, window_bounds = array<i64: 1, 128>}, {pipeline_mode = #tpu.pipeline_mode<synchronous>, transform_indices = @transform_3, window_bounds = array<i64: 128, 128>}, {pipeline_mode = #tpu.pipeline_mode<synchronous>, transform_indices = @transform_4, window_bounds = array<i64: 1, 128>}, {pipeline_mode = #tpu.pipeline_mode<synchronous>, transform_indices = @transform_5, window_bounds = array<i64: 128, 128>}, {pipeline_mode = #tpu.pipeline_mode<synchronous>, transform_indices = @transform_6, window_bounds = array<i64: 1, 128>}, {pipeline_mode = #tpu.pipeline_mode<synchronous>, transform_indices = @transform_7, window_bounds = array<i64: 128, 128>}, {pipeline_mode = #tpu.pipeline_mode<synchronous>, transform_indices = @transform_8, window_bounds = array<i64: 1, 128>}, {transform_indices = @transform_9, window_bounds = array<i64: 8, 128>}, {transform_indices = @transform_10, window_bounds = array<i64: 8, 128>}]} {
    %c0 = arith.constant 0 : index
    %c0_0 = arith.constant 0 : index
    %0 = vector.load %arg1[%c0, %c0_0] : memref<8x48xf32, #tpu.memory_space<vmem>>, vector<8x48xf32>
    %c0_1 = arith.constant 0 : index
    %c0_2 = arith.constant 0 : index
    %1 = vector.load %arg2[%c0_1, %c0_2] : memref<48x128xbf16, #tpu.memory_space<vmem>>, vector<48x128xbf16>
    %c0_3 = arith.constant 0 : index
    %c0_4 = arith.constant 0 : index
    %2 = vector.load %arg3[%c0_3, %c0_4] : memref<1x128xf32, #tpu.memory_space<vmem>>, vector<1x128xf32>
    %3 = arith.truncf %0 : vector<8x48xf32> to vector<8x48xbf16>
    %cst = arith.constant dense<0.000000e+00> : vector<8x128xf32>
    %4 = tpu.matmul %3, %1, %cst {dimension_numbers = #tpu.dot_dimension_numbers<[1], [0], [0], [1], [0, 0, 1, 1], [], []>} : vector<8x48xbf16>, vector<48x128xbf16>, vector<8x128xf32> -> vector<8x128xf32>
    %5 = vector.broadcast %2 : vector<1x128xf32> to vector<8x128xf32>
    %6 = arith.addf %4, %5 : vector<8x128xf32>
    %cst_5 = arith.constant 0.000000e+00 : f32
    %7 = vector.broadcast %cst_5 : f32 to vector<8x128xf32>
    %8 = arith.maximumf %6, %7 : vector<8x128xf32>
    %c0_6 = arith.constant 0 : index
    %c0_7 = arith.constant 0 : index
    %9 = vector.load %arg4[%c0_6, %c0_7] : memref<128x128xbf16, #tpu.memory_space<vmem>>, vector<128x128xbf16>
    %c0_8 = arith.constant 0 : index
    %c0_9 = arith.constant 0 : index
    %10 = vector.load %arg5[%c0_8, %c0_9] : memref<1x128xf32, #tpu.memory_space<vmem>>, vector<1x128xf32>
    %11 = arith.truncf %8 : vector<8x128xf32> to vector<8x128xbf16>
    %cst_10 = arith.constant dense<0.000000e+00> : vector<8x128xf32>
    %12 = tpu.matmul %11, %9, %cst_10 {dimension_numbers = #tpu.dot_dimension_numbers<[1], [0], [0], [1], [0, 0, 1, 1], [], []>} : vector<8x128xbf16>, vector<128x128xbf16>, vector<8x128xf32> -> vector<8x128xf32>
    %13 = vector.broadcast %10 : vector<1x128xf32> to vector<8x128xf32>
    %14 = arith.addf %12, %13 : vector<8x128xf32>
    %cst_11 = arith.constant 0.000000e+00 : f32
    %15 = vector.broadcast %cst_11 : f32 to vector<8x128xf32>
    %16 = arith.maximumf %14, %15 : vector<8x128xf32>
    %c0_12 = arith.constant 0 : index
    %c0_13 = arith.constant 0 : index
    %17 = vector.load %arg6[%c0_12, %c0_13] : memref<128x128xbf16, #tpu.memory_space<vmem>>, vector<128x128xbf16>
    %c0_14 = arith.constant 0 : index
    %c0_15 = arith.constant 0 : index
    %18 = vector.load %arg7[%c0_14, %c0_15] : memref<1x128xf32, #tpu.memory_space<vmem>>, vector<1x128xf32>
    %19 = arith.truncf %16 : vector<8x128xf32> to vector<8x128xbf16>
    %cst_16 = arith.constant dense<0.000000e+00> : vector<8x128xf32>
    %20 = tpu.matmul %19, %17, %cst_16 {dimension_numbers = #tpu.dot_dimension_numbers<[1], [0], [0], [1], [0, 0, 1, 1], [], []>} : vector<8x128xbf16>, vector<128x128xbf16>, vector<8x128xf32> -> vector<8x128xf32>
    %21 = vector.broadcast %18 : vector<1x128xf32> to vector<8x128xf32>
    %22 = arith.addf %20, %21 : vector<8x128xf32>
    %cst_17 = arith.constant 0.000000e+00 : f32
    %23 = vector.broadcast %cst_17 : f32 to vector<8x128xf32>
    %24 = arith.maximumf %22, %23 : vector<8x128xf32>
    %c0_18 = arith.constant 0 : index
    %c0_19 = arith.constant 0 : index
    %25 = vector.load %arg10[%c0_18, %c0_19] : memref<8x128xf32, #tpu.memory_space<vmem>>, vector<8x128xf32>
    tpu.vector_store %arg10[%c0_18, %c0_19], %24 {strides = array<i32>} : memref<8x128xf32, #tpu.memory_space<vmem>>, vector<8x128xf32>,
    %c0_20 = arith.constant 0 : index
    %c0_21 = arith.constant 0 : index
    %26 = vector.load %arg8[%c0_20, %c0_21] : memref<128x128xbf16, #tpu.memory_space<vmem>>, vector<128x128xbf16>
    %c0_22 = arith.constant 0 : index
    %c0_23 = arith.constant 0 : index
    %27 = vector.load %arg9[%c0_22, %c0_23] : memref<1x128xf32, #tpu.memory_space<vmem>>, vector<1x128xf32>
    %28 = arith.truncf %24 : vector<8x128xf32> to vector<8x128xbf16>
    %cst_24 = arith.constant dense<0.000000e+00> : vector<8x128xf32>
    %29 = tpu.matmul %28, %26, %cst_24 {dimension_numbers = #tpu.dot_dimension_numbers<[1], [0], [0], [1], [0, 0, 1, 1], [], []>} : vector<8x128xbf16>, vector<128x128xbf16>, vector<8x128xf32> -> vector<8x128xf32>
    %30 = vector.broadcast %27 : vector<1x128xf32> to vector<8x128xf32>
    %31 = arith.addf %29, %30 : vector<8x128xf32>
    %32 = arith.negf %31 : vector<8x128xf32>
    %33 = math.exp %32 : vector<8x128xf32>
    %cst_25 = arith.constant 1.000000e+00 : f32
    %34 = vector.broadcast %cst_25 : f32 to vector<8x128xf32>
    %35 = arith.addf %34, %33 : vector<8x128xf32>
    %36 = arith.divf %34, %35 : vector<8x128xf32>
    %c0_26 = arith.constant 0 : index
    %c0_27 = arith.constant 0 : index
    %37 = vector.load %arg11[%c0_26, %c0_27] : memref<8x128xf32, #tpu.memory_space<vmem>>, vector<8x128xf32>
    tpu.vector_store %arg11[%c0_26, %c0_27], %36 {strides = array<i32>} : memref<8x128xf32, #tpu.memory_space<vmem>>, vector<8x128xf32>,
    return
  }
  func.func @transform_0(%arg0: i32) -> (i32, i32) {
    %c0_i32 = arith.constant 0 : i32
    %c0_i32_0 = arith.constant 0 : i32
    return %arg0, %c0_i32 : i32, i32
  }
  func.func @transform_1(%arg0: i32) -> (i32, i32) {
    %c0_i32 = arith.constant 0 : i32
    %c0_i32_0 = arith.constant 0 : i32
    %c0_i32_1 = arith.constant 0 : i32
    return %c0_i32, %c0_i32_0 : i32, i32
  }
  func.func @transform_2(%arg0: i32) -> (i32, i32) {
    %c0_i32 = arith.constant 0 : i32
    %c0_i32_0 = arith.constant 0 : i32
    %c0_i32_1 = arith.constant 0 : i32
    return %c0_i32, %c0_i32_0 : i32, i32
  }
  func.func @transform_3(%arg0: i32) -> (i32, i32) {
    %c0_i32 = arith.constant 0 : i32
    %c0_i32_0 = arith.constant 0 : i32
    %c0_i32_1 = arith.constant 0 : i32
    return %c0_i32, %c0_i32_0 : i32, i32
  }
  func.func @transform_4(%arg0: i32) -> (i32, i32) {
    %c0_i32 = arith.constant 0 : i32
    %c0_i32_0 = arith.constant 0 : i32
    %c0_i32_1 = arith.constant 0 : i32
    return %c0_i32, %c0_i32_0 : i32, i32
  }
  func.func @transform_5(%arg0: i32) -> (i32, i32) {
    %c0_i32 = arith.constant 0 : i32
    %c0_i32_0 = arith.constant 0 : i32
    %c0_i32_1 = arith.constant 0 : i32
    return %c0_i32, %c0_i32_0 : i32, i32
  }
  func.func @transform_6(%arg0: i32) -> (i32, i32) {
    %c0_i32 = arith.constant 0 : i32
    %c0_i32_0 = arith.constant 0 : i32
    %c0_i32_1 = arith.constant 0 : i32
    return %c0_i32, %c0_i32_0 : i32, i32
  }
  func.func @transform_7(%arg0: i32) -> (i32, i32) {
    %c0_i32 = arith.constant 0 : i32
    %c0_i32_0 = arith.constant 0 : i32
    %c0_i32_1 = arith.constant 0 : i32
    return %c0_i32, %c0_i32_0 : i32, i32
  }
  func.func @transform_8(%arg0: i32) -> (i32, i32) {
    %c0_i32 = arith.constant 0 : i32
    %c0_i32_0 = arith.constant 0 : i32
    %c0_i32_1 = arith.constant 0 : i32
    return %c0_i32, %c0_i32_0 : i32, i32
  }
  func.func @transform_9(%arg0: i32) -> (i32, i32) {
    %c0_i32 = arith.constant 0 : i32
    %c0_i32_0 = arith.constant 0 : i32
    return %arg0, %c0_i32 : i32, i32
  }
  func.func @transform_10(%arg0: i32) -> (i32, i32) {
    %c0_i32 = arith.constant 0 : i32
    %c0_i32_0 = arith.constant 0 : i32
    return %arg0, %c0_i32 : i32, i32
  }
}

</mosaic_0001>

<llo_original>
// kernel: forward.1
$region0: #{forward.1}
  #allocation0 [shape = 'u32[]', space=smem, size = 0x4, offset = 0x4, fixed_abs, tag = 'smem constant byte address 0x4 - core index']
  #allocation1 [shape = 'u32[144,128]{1,0:T(1,128)}', space=vmem, size = 0x12000, scoped, tag = 'internal scratch']
  %s0 = inlined_call_operand.vmem [shape: f32[8,48], index: 0, kind: input, shape index: {}]
  %s1 = inlined_call_operand.hbm [shape: bf16[48,128], index: 1, kind: input, shape index: {}]
  %s2 = inlined_call_operand.vmem [shape: f32[1,128], index: 2, kind: input, shape index: {}]
  %s3 = inlined_call_operand.hbm [shape: bf16[128,128], index: 3, kind: input, shape index: {}]
  %s4 = inlined_call_operand.vmem [shape: f32[1,128], index: 4, kind: input, shape index: {}]
  %s5 = inlined_call_operand.hbm [shape: bf16[128,128], index: 5, kind: input, shape index: {}]
  %s6 = inlined_call_operand.vmem [shape: f32[1,128], index: 6, kind: input, shape index: {}]
  %s7 = inlined_call_operand.vmem [shape: bf16[128,128], index: 7, kind: input, shape index: {}]
  %s8 = inlined_call_operand.vmem [shape: f32[1,128], index: 8, kind: input, shape index: {}]
  %s9 = inlined_call_operand.hbm [shape: f32[8,128], index: 9, kind: output, shape index: {0}]
  %s10 = inlined_call_operand.vmem [shape: f32[8,128], index: 10, kind: output, shape index: {1}]
  %11 = xla_tuple %s9, %s10
  %s12 = sld [smem:[#allocation0]]
  $region66: #{forward.1} parent=0
    _
  %s14 = ssub.s32 1, %s12
  %s15 = scalar_select 0, %s14, %s12
  $region1: #{forward.1} parent=0
    #allocation2 [shape = 'u8[12288]{0}', space=vmem, size = 0x3000, scoped, tag = 'input window, operand 1, single buffered']
    #allocation3 [shape = 's32[1]{0}', space=sflag, size = 0x4, scoped, tag = 'scoped memory for forward.1']
    #allocation4 [shape = 's32[1]{0}', space=sflag, size = 0x4, scoped, tag = 'scoped memory for forward.1']
    #allocation5 [shape = 'u8[32768]{0}', space=vmem, size = 0x8000, scoped, tag = 'input window, operand 3, single buffered']
    #allocation6 [shape = 's32[1]{0}', space=sflag, size = 0x4, scoped, tag = 'scoped memory for forward.1']
    #allocation7 [shape = 'u8[32768]{0}', space=vmem, size = 0x8000, scoped, tag = 'input window, operand 5, single buffered']
    #allocation8 [shape = 'u8[4096]{0}', space=vmem, size = 0x1000, scoped, tag = 'output window, operand 0, single buffered']
    %16 = vsyncpa [#allocation3], 0
    %17 = vsyncpa [#allocation6], 0
    %18 = vsyncpa [#allocation4], 0
    // Predicated region
    $region2: #{forward.1} parent=1 // pred_check
      _
    $region3: #{forward.1} parent=1 // pred_check_branch
      %20 = sbr.rel (0) target = $region5
    $region4: #{forward.1} parent=1 // pred_region
      _
    $region5: #{forward.1} parent=1 // pred_fallthru
      _
    // Predicated region
    $region6: #{forward.1} parent=1 // pred_check
      _
    $region7: #{forward.1} parent=1 // pred_check_branch
      %22 = sbr.rel (0) target = $region9
    $region8: #{forward.1} parent=1 // pred_region
      %s24 = ssub.s32 384, 384
      %25 = vsyncadd [#allocation3], %s24
      %s26 = sshll.u32 [#allocation2], 4
      %s27 = int_to_ptr.vmem [resolvable:$true] %s26
      %32 = dma.hbm_to_vmem [thread:$0]  %s1, 384, %s27, [#allocation3], 64, 64, 4
    $region9: #{forward.1} parent=1 // pred_fallthru
      _
    // Predicated region
    $region10: #{forward.1} parent=1 // pred_check
      _
    $region11: #{forward.1} parent=1 // pred_check_branch
      %34 = sbr.rel (0) target = $region13
    $region12: #{forward.1} parent=1 // pred_region
      _
    $region13: #{forward.1} parent=1 // pred_fallthru
      _
    // Predicated region
    $region14: #{forward.1} parent=1 // pred_check
      _
    $region15: #{forward.1} parent=1 // pred_check_branch
      %36 = sbr.rel (0) target = $region17
    $region16: #{forward.1} parent=1 // pred_region
      %s38 = ssub.s32 1024, 1024
      %39 = vsyncadd [#allocation6], %s38
      %s40 = sshll.u32 [#allocation5], 4
      %s41 = int_to_ptr.vmem [resolvable:$true] %s40
      %46 = dma.hbm_to_vmem [thread:$0]  %s3, 1024, %s41, [#allocation6], 64, 64, 4
    $region17: #{forward.1} parent=1 // pred_fallthru
      _
    // Predicated region
    $region18: #{forward.1} parent=1 // pred_check
      _
    $region19: #{forward.1} parent=1 // pred_check_branch
      %48 = sbr.rel (0) target = $region21
    $region20: #{forward.1} parent=1 // pred_region
      _
    $region21: #{forward.1} parent=1 // pred_fallthru
      _
    // Predicated region
    $region22: #{forward.1} parent=1 // pred_check
      _
    $region23: #{forward.1} parent=1 // pred_check_branch
      %50 = sbr.rel (0) target = $region25
    $region24: #{forward.1} parent=1 // pred_region
      %s52 = ssub.s32 1024, 1024
      %53 = vsyncadd [#allocation6], %s52
      %s54 = sshll.u32 [#allocation7], 4
      %s55 = int_to_ptr.vmem [resolvable:$true] %s54
      %60 = dma.hbm_to_vmem [thread:$0]  %s5, 1024, %s55, [#allocation6], 64, 64, 4
    $region25: #{forward.1} parent=1 // pred_fallthru
      _
    // Predicated region
    $region26: #{forward.1} parent=1 // pred_check
      _
    $region27: #{forward.1} parent=1 // pred_check_branch
      %62 = sbr.rel (0) target = $region29
    $region28: #{forward.1} parent=1 // pred_region
      _
    $region29: #{forward.1} parent=1 // pred_fallthru
      _
    // Predicated region
    $region30: #{forward.1} parent=1 // pred_check
      _
    $region31: #{forward.1} parent=1 // pred_check_branch
      %64 = sbr.rel (0) target = $region33
    $region32: #{forward.1} parent=1 // pred_region
      _
    $region33: #{forward.1} parent=1 // pred_fallthru
      _
    // Predicated region
    $region34: #{forward.1} parent=1 // pred_check
      _
    $region35: #{forward.1} parent=1 // pred_check_branch
      %66 = sbr.rel (0) target = $region37
    $region36: #{forward.1} parent=1 // pred_region
      _
    $region37: #{forward.1} parent=1 // pred_fallthru
      _
    // Predicated region
    $region38: #{forward.1} parent=1 // pred_check
      _
    $region39: #{forward.1} parent=1 // pred_check_branch
      %68 = sbr.rel (0) target = $region41
    $region40: #{forward.1} parent=1 // pred_region
      %69 = dma.done [#allocation3], 384
    $region41: #{forward.1} parent=1 // pred_fallthru
      _
    // Predicated region
    $region42: #{forward.1} parent=1 // pred_check
      _
    $region43: #{forward.1} parent=1 // pred_check_branch
      %71 = sbr.rel (0) target = $region45
    $region44: #{forward.1} parent=1 // pred_region
      %72 = dma.done [#allocation6], 1024
    $region45: #{forward.1} parent=1 // pred_fallthru
      _
    // Predicated region
    $region46: #{forward.1} parent=1 // pred_check
      _
    $region47: #{forward.1} parent=1 // pred_check_branch
      %74 = sbr.rel (0) target = $region49
    $region48: #{forward.1} parent=1 // pred_region
      %75 = dma.done [#allocation6], 1024
    $region49: #{forward.1} parent=1 // pred_fallthru
      _
    %v77 = vld [vmem:[%s0] sm:$0xff]
    %v78 = vld [vmem:[#allocation2] sm:$0xf]
    %v79 = vld [vmem:[#allocation2 + $0x4] sm:$0xf]
    %v80 = vld [vmem:[#allocation2 + $0x8] sm:$0xf]
    %v81 = vld [vmem:[#allocation2 + $0xc] sm:$0xf]
    %v82 = vld [vmem:[#allocation2 + $0x10] sm:$0xf]
    %v83 = vld [vmem:[#allocation2 + $0x14] sm:$0xf]
    %v84 = vld [vmem:[%s2] sm:$0x1]
    %v85 = vpack.c.bf16 %v77, %v77
    %v87 = vlaneseq
    %v88 = vshrl.u32 %v87, 7
    %v89 = vsub.s32 0, %v88
    %v90 = vrot.slane %v84, %v89
    %v98 = vunpack.c.l.b16 %v78
    %v99 = vunpack.c.l.b16 %v79
    %v100 = vunpack.c.l.b16 %v80
    %v101 = vunpack.c.l.b16 %v81
    %v102 = vunpack.c.l.b16 %v82
    %v103 = vunpack.c.l.b16 %v83
    %v104 = vpack.c.b16 %v99, %v98
    %v105 = vpack.c.b16 %v101, %v100
    %v106 = vpack.c.b16 %v103, %v102
    %vm110 = vcmask 392192
    %v112 = vsel %vm110, %v85, 0
    %114 = vmatprep.subr.bf16.mxu0 0
    %115 = vmatpush1.bf16.msra.mxu0 %v104
    %116 = vmatprep.subr.bf16.mxu0 0
    %117 = vmatpush1.bf16.msra.mxu0 %v105
    %118 = vmatprep.subr.bf16.mxu0 0
    %119 = vmatpush1.bf16.msra.mxu0 %v106
    %120 = vmatprep.subr.bf16.mxu0 0
    %121 = vmatpush1.bf16.msra.mxu0 0
    %122 = vmatprep.subr.bf16.mxu0 0
    %123 = vmatpush1.bf16.msra.mxu0 0
    %124 = vmatprep.subr.bf16.mxu0 0
    %125 = vmatpush1.bf16.msra.mxu0 0
    %126 = vmatprep.subr.bf16.mxu0 0
    %127 = vmatpush1.bf16.msra.mxu0 0
    %128 = vmatprep.subr.bf16.mxu0 0
    %129 = vmatpush1.bf16.msra.mxu0 0
    %130 = vmatprep.subr.bf16.mxu0 0
    %131 = vmatpush1.bf16.msra.mxu0 0
    %132 = vmatprep.subr.bf16.mxu0 0
    %133 = vmatpush1.bf16.msra.mxu0 0
    %134 = vmatprep.subr.bf16.mxu0 0
    %135 = vmatpush1.bf16.msra.mxu0 0
    %136 = vmatprep.subr.bf16.mxu0 0
    %137 = vmatpush1.bf16.msra.mxu0 0
    %138 = vmatprep.subr.bf16.mxu0 0
    %139 = vmatpush1.bf16.msra.mxu0 0
    %140 = vmatprep.subr.bf16.mxu0 0
    %141 = vmatpush1.bf16.msra.mxu0 0
    %142 = vmatprep.subr.bf16.mxu0 0
    %143 = vmatpush1.bf16.msra.mxu0 0
    %144 = vmatprep.subr.bf16.mxu0 0
    %145 = vmatpush1.bf16.msra.mxu0 0
    %146 = vmatprep.mubr.bf16.mxu0 0
    %147 = vmatmul.mubr.bf16.gmra.mrb[0].mxu0 %v112
    %v148 = vpop.f32.mrb[0].mxu0
    %v149 = vadd.f32 %v90, %v148
    %v150 = vpop.f32.mrb[0].mxu0
    %v151 = vpop.f32.mrb[0].mxu0
    %v152 = vpop.f32.mrb[0].mxu0
    %153 = vdwg.mxu0
    %v154 = vmax.f32 %v149, 0.0
    %v155 = vld [vmem:[#allocation5] sm:$0xf]
    %v156 = vld [vmem:[#allocation5 + $0x4] sm:$0xf]
    %v157 = vld [vmem:[#allocation5 + $0x8] sm:$0xf]
    %v158 = vld [vmem:[#allocation5 + $0xc] sm:$0xf]
    %v159 = vld [vmem:[#allocation5 + $0x10] sm:$0xf]
    %v160 = vld [vmem:[#allocation5 + $0x14] sm:$0xf]
    %v161 = vld [vmem:[#allocation5 + $0x18] sm:$0xf]
    %v162 = vld [vmem:[#allocation5 + $0x1c] sm:$0xf]
    %v163 = vld [vmem:[#allocation5 + $0x20] sm:$0xf]
    %v164 = vld [vmem:[#allocation5 + $0x24] sm:$0xf]
    %v165 = vld [vmem:[#allocation5 + $0x28] sm:$0xf]
    %v166 = vld [vmem:[#allocation5 + $0x2c] sm:$0xf]
    %v167 = vld [vmem:[#allocation5 + $0x30] sm:$0xf]
    %v168 = vld [vmem:[#allocation5 + $0x34] sm:$0xf]
    %v169 = vld [vmem:[#allocation5 + $0x38] sm:$0xf]
    %v170 = vld [vmem:[#allocation5 + $0x3c] sm:$0xf]
    %v171 = vld [vmem:[%s4] sm:$0x1]
    %v172 = vpack.c.bf16 %v154, %v154
    %v174 = vlaneseq
    %v175 = vshrl.u32 %v174, 7
    %v176 = vsub.s32 0, %v175
    %v177 = vrot.slane %v171, %v176
    %v195 = vunpack.c.l.b16 %v155
    %v196 = vunpack.c.l.b16 %v156
    %v197 = vunpack.c.l.b16 %v157
    %v198 = vunpack.c.l.b16 %v158
    %v199 = vunpack.c.l.b16 %v159
    %v200 = vunpack.c.l.b16 %v160
    %v201 = vunpack.c.l.b16 %v161
    %v202 = vunpack.c.l.b16 %v162
    %v203 = vunpack.c.l.b16 %v163
    %v204 = vunpack.c.l.b16 %v164
    %v205 = vunpack.c.l.b16 %v165
    %v206 = vunpack.c.l.b16 %v166
    %v207 = vunpack.c.l.b16 %v167
    %v208 = vunpack.c.l.b16 %v168
    %v209 = vunpack.c.l.b16 %v169
    %v210 = vunpack.c.l.b16 %v170
    %v211 = vpack.c.b16 %v196, %v195
    %v212 = vpack.c.b16 %v198, %v197
    %v213 = vpack.c.b16 %v200, %v199
    %v214 = vpack.c.b16 %v202, %v201
    %v215 = vpack.c.b16 %v204, %v203
    %v216 = vpack.c.b16 %v206, %v205
    %v217 = vpack.c.b16 %v208, %v207
    %v218 = vpack.c.b16 %v210, %v209
    %227 = vmatprep.subr.bf16.mxu0 0
    %228 = vmatpush1.bf16.msra.mxu0 %v211
    %229 = vmatprep.subr.bf16.mxu0 0
    %230 = vmatpush1.bf16.msra.mxu0 %v212
    %231 = vmatprep.subr.bf16.mxu0 0
    %232 = vmatpush1.bf16.msra.mxu0 %v213
    %233 = vmatprep.subr.bf16.mxu0 0
    %234 = vmatpush1.bf16.msra.mxu0 %v214
    %235 = vmatprep.subr.bf16.mxu0 0
    %236 = vmatpush1.bf16.msra.mxu0 %v215
    %237 = vmatprep.subr.bf16.mxu0 0
    %238 = vmatpush1.bf16.msra.mxu0 %v216
    %239 = vmatprep.subr.bf16.mxu0 0
    %240 = vmatpush1.bf16.msra.mxu0 %v217
    %241 = vmatprep.subr.bf16.mxu0 0
    %242 = vmatpush1.bf16.msra.mxu0 %v218
    %243 = vmatprep.subr.bf16.mxu0 0
    %244 = vmatpush1.bf16.msra.mxu0 0
    %245 = vmatprep.subr.bf16.mxu0 0
    %246 = vmatpush1.bf16.msra.mxu0 0
    %247 = vmatprep.subr.bf16.mxu0 0
    %248 = vmatpush1.bf16.msra.mxu0 0
    %249 = vmatprep.subr.bf16.mxu0 0
    %250 = vmatpush1.bf16.msra.mxu0 0
    %251 = vmatprep.subr.bf16.mxu0 0
    %252 = vmatpush1.bf16.msra.mxu0 0
    %253 = vmatprep.subr.bf16.mxu0 0
    %254 = vmatpush1.bf16.msra.mxu0 0
    %255 = vmatprep.subr.bf16.mxu0 0
    %256 = vmatpush1.bf16.msra.mxu0 0
    %257 = vmatprep.subr.bf16.mxu0 0
    %258 = vmatpush1.bf16.msra.mxu0 0
    %259 = vmatprep.mubr.bf16.mxu0 0
    %260 = vmatmul.mubr.bf16.gmra.mrb[0].mxu0 %v172
    %v261 = vpop.f32.mrb[0].mxu0
    %v262 = vadd.f32 %v177, %v261
    %v263 = vpop.f32.mrb[0].mxu0
    %v264 = vpop.f32.mrb[0].mxu0
    %v265 = vpop.f32.mrb[0].mxu0
    %266 = vdwg.mxu0
    %v267 = vmax.f32 %v262, 0.0
    %v268 = vld [vmem:[#allocation7] sm:$0xf]
    %v269 = vld [vmem:[#allocation7 + $0x4] sm:$0xf]
    %v270 = vld [vmem:[#allocation7 + $0x8] sm:$0xf]
    %v271 = vld [vmem:[#allocation7 + $0xc] sm:$0xf]
    %v272 = vld [vmem:[#allocation7 + $0x10] sm:$0xf]
    %v273 = vld [vmem:[#allocation7 + $0x14] sm:$0xf]
    %v274 = vld [vmem:[#allocation7 + $0x18] sm:$0xf]
    %v275 = vld [vmem:[#allocation7 + $0x1c] sm:$0xf]
    %v276 = vld [vmem:[#allocation7 + $0x20] sm:$0xf]
    %v277 = vld [vmem:[#allocation7 + $0x24] sm:$0xf]
    %v278 = vld [vmem:[#allocation7 + $0x28] sm:$0xf]
    %v279 = vld [vmem:[#allocation7 + $0x2c] sm:$0xf]
    %v280 = vld [vmem:[#allocation7 + $0x30] sm:$0xf]
    %v281 = vld [vmem:[#allocation7 + $0x34] sm:$0xf]
    %v282 = vld [vmem:[#allocation7 + $0x38] sm:$0xf]
    %v283 = vld [vmem:[#allocation7 + $0x3c] sm:$0xf]
    %v284 = vld [vmem:[%s6] sm:$0x1]
    %v285 = vpack.c.bf16 %v267, %v267
    %v287 = vlaneseq
    %v288 = vshrl.u32 %v287, 7
    %v289 = vsub.s32 0, %v288
    %v290 = vrot.slane %v284, %v289
    %v308 = vunpack.c.l.b16 %v268
    %v309 = vunpack.c.l.b16 %v269
    %v310 = vunpack.c.l.b16 %v270
    %v311 = vunpack.c.l.b16 %v271
    %v312 = vunpack.c.l.b16 %v272
    %v313 = vunpack.c.l.b16 %v273
    %v314 = vunpack.c.l.b16 %v274
    %v315 = vunpack.c.l.b16 %v275
    %v316 = vunpack.c.l.b16 %v276
    %v317 = vunpack.c.l.b16 %v277
    %v318 = vunpack.c.l.b16 %v278
    %v319 = vunpack.c.l.b16 %v279
    %v320 = vunpack.c.l.b16 %v280
    %v321 = vunpack.c.l.b16 %v281
    %v322 = vunpack.c.l.b16 %v282
    %v323 = vunpack.c.l.b16 %v283
    %v324 = vpack.c.b16 %v309, %v308
    %v325 = vpack.c.b16 %v311, %v310
    %v326 = vpack.c.b16 %v313, %v312
    %v327 = vpack.c.b16 %v315, %v314
    %v328 = vpack.c.b16 %v317, %v316
    %v329 = vpack.c.b16 %v319, %v318
    %v330 = vpack.c.b16 %v321, %v320
    %v331 = vpack.c.b16 %v323, %v322
    %340 = vmatprep.subr.bf16.mxu0 0
    %341 = vmatpush1.bf16.msra.mxu0 %v324
    %342 = vmatprep.subr.bf16.mxu0 0
    %343 = vmatpush1.bf16.msra.mxu0 %v325
    %344 = vmatprep.subr.bf16.mxu0 0
    %345 = vmatpush1.bf16.msra.mxu0 %v326
    %346 = vmatprep.subr.bf16.mxu0 0
    %347 = vmatpush1.bf16.msra.mxu0 %v327
    %348 = vmatprep.subr.bf16.mxu0 0
    %349 = vmatpush1.bf16.msra.mxu0 %v328
    %350 = vmatprep.subr.bf16.mxu0 0
    %351 = vmatpush1.bf16.msra.mxu0 %v329
    %352 = vmatprep.subr.bf16.mxu0 0
    %353 = vmatpush1.bf16.msra.mxu0 %v330
    %354 = vmatprep.subr.bf16.mxu0 0
    %355 = vmatpush1.bf16.msra.mxu0 %v331
    %356 = vmatprep.subr.bf16.mxu0 0
    %357 = vmatpush1.bf16.msra.mxu0 0
    %358 = vmatprep.subr.bf16.mxu0 0
    %359 = vmatpush1.bf16.msra.mxu0 0
    %360 = vmatprep.subr.bf16.mxu0 0
    %361 = vmatpush1.bf16.msra.mxu0 0
    %362 = vmatprep.subr.bf16.mxu0 0
    %363 = vmatpush1.bf16.msra.mxu0 0
    %364 = vmatprep.subr.bf16.mxu0 0
    %365 = vmatpush1.bf16.msra.mxu0 0
    %366 = vmatprep.subr.bf16.mxu0 0
    %367 = vmatpush1.bf16.msra.mxu0 0
    %368 = vmatprep.subr.bf16.mxu0 0
    %369 = vmatpush1.bf16.msra.mxu0 0
    %370 = vmatprep.subr.bf16.mxu0 0
    %371 = vmatpush1.bf16.msra.mxu0 0
    %372 = vmatprep.mubr.bf16.mxu0 0
    %373 = vmatmul.mubr.bf16.gmra.mrb[0].mxu0 %v285
    %v374 = vpop.f32.mrb[0].mxu0
    %v375 = vadd.f32 %v290, %v374
    %v376 = vpop.f32.mrb[0].mxu0
    %v377 = vpop.f32.mrb[0].mxu0
    %v378 = vpop.f32.mrb[0].mxu0
    %379 = vdwg.mxu0
    %v380 = vmax.f32 %v375, 0.0
    %381 = vst [vmem:[#allocation8] sm:$0xff] %v380
    %v382 = vld [vmem:[%s7] sm:$0xf]
    %v383 = vld [vmem:[%s7 + $0x4] sm:$0xf]
    %v384 = vld [vmem:[%s7 + $0x8] sm:$0xf]
    %v385 = vld [vmem:[%s7 + $0xc] sm:$0xf]
    %v386 = vld [vmem:[%s7 + $0x10] sm:$0xf]
    %v387 = vld [vmem:[%s7 + $0x14] sm:$0xf]
    %v388 = vld [vmem:[%s7 + $0x18] sm:$0xf]
    %v389 = vld [vmem:[%s7 + $0x1c] sm:$0xf]
    %v390 = vld [vmem:[%s7 + $0x20] sm:$0xf]
    %v391 = vld [vmem:[%s7 + $0x24] sm:$0xf]
    %v392 = vld [vmem:[%s7 + $0x28] sm:$0xf]
    %v393 = vld [vmem:[%s7 + $0x2c] sm:$0xf]
    %v394 = vld [vmem:[%s7 + $0x30] sm:$0xf]
    %v395 = vld [vmem:[%s7 + $0x34] sm:$0xf]
    %v396 = vld [vmem:[%s7 + $0x38] sm:$0xf]
    %v397 = vld [vmem:[%s7 + $0x3c] sm:$0xf]
    %v398 = vld [vmem:[%s8] sm:$0x1]
    %v399 = vpack.c.bf16 %v380, %v380
    %v401 = vlaneseq
    %v402 = vshrl.u32 %v401, 7
    %v403 = vsub.s32 0, %v402
    %v404 = vrot.slane %v398, %v403
    %v422 = vunpack.c.l.b16 %v382
    %v423 = vunpack.c.l.b16 %v383
    %v424 = vunpack.c.l.b16 %v384
    %v425 = vunpack.c.l.b16 %v385
    %v426 = vunpack.c.l.b16 %v386
    %v427 = vunpack.c.l.b16 %v387
    %v428 = vunpack.c.l.b16 %v388
    %v429 = vunpack.c.l.b16 %v389
    %v430 = vunpack.c.l.b16 %v390
    %v431 = vunpack.c.l.b16 %v391
    %v432 = vunpack.c.l.b16 %v392
    %v433 = vunpack.c.l.b16 %v393
    %v434 = vunpack.c.l.b16 %v394
    %v435 = vunpack.c.l.b16 %v395
    %v436 = vunpack.c.l.b16 %v396
    %v437 = vunpack.c.l.b16 %v397
    %v438 = vpack.c.b16 %v423, %v422
    %v439 = vpack.c.b16 %v425, %v424
    %v440 = vpack.c.b16 %v427, %v426
    %v441 = vpack.c.b16 %v429, %v428
    %v442 = vpack.c.b16 %v431, %v430
    %v443 = vpack.c.b16 %v433, %v432
    %v444 = vpack.c.b16 %v435, %v434
    %v445 = vpack.c.b16 %v437, %v436
    %454 = vmatprep.subr.bf16.mxu0 0
    %455 = vmatpush1.bf16.msra.mxu0 %v438
    %456 = vmatprep.subr.bf16.mxu0 0
    %457 = vmatpush1.bf16.msra.mxu0 %v439
    %458 = vmatprep.subr.bf16.mxu0 0
    %459 = vmatpush1.bf16.msra.mxu0 %v440
    %460 = vmatprep.subr.bf16.mxu0 0
    %461 = vmatpush1.bf16.msra.mxu0 %v441
    %462 = vmatprep.subr.bf16.mxu0 0
    %463 = vmatpush1.bf16.msra.mxu0 %v442
    %464 = vmatprep.subr.bf16.mxu0 0
    %465 = vmatpush1.bf16.msra.mxu0 %v443
    %466 = vmatprep.subr.bf16.mxu0 0
    %467 = vmatpush1.bf16.msra.mxu0 %v444
    %468 = vmatprep.subr.bf16.mxu0 0
    %469 = vmatpush1.bf16.msra.mxu0 %v445
    %470 = vmatprep.subr.bf16.mxu0 0
    %471 = vmatpush1.bf16.msra.mxu0 0
    %472 = vmatprep.subr.bf16.mxu0 0
    %473 = vmatpush1.bf16.msra.mxu0 0
    %474 = vmatprep.subr.bf16.mxu0 0
    %475 = vmatpush1.bf16.msra.mxu0 0
    %476 = vmatprep.subr.bf16.mxu0 0
    %477 = vmatpush1.bf16.msra.mxu0 0
    %478 = vmatprep.subr.bf16.mxu0 0
    %479 = vmatpush1.bf16.msra.mxu0 0
    %480 = vmatprep.subr.bf16.mxu0 0
    %481 = vmatpush1.bf16.msra.mxu0 0
    %482 = vmatprep.subr.bf16.mxu0 0
    %483 = vmatpush1.bf16.msra.mxu0 0
    %484 = vmatprep.subr.bf16.mxu0 0
    %485 = vmatpush1.bf16.msra.mxu0 0
    %486 = vmatprep.mubr.bf16.mxu0 0
    %487 = vmatmul.mubr.bf16.gmra.mrb[0].mxu0 %v399
    %v488 = vpop.f32.mrb[0].mxu0
    %v489 = vadd.f32 %v404, %v488
    %v490 = vpop.f32.mrb[0].mxu0
    %v491 = vpop.f32.mrb[0].mxu0
    %v492 = vpop.f32.mrb[0].mxu0
    %493 = vdwg.mxu0
    %v494 = vxor.u32 %v489, 2147483648
    %v495 = vmul.f32 %v494, 1.442695
    %v496 = vpow.pop %v495
    %v497 = vadd.f32 %v496, 1.0
    %v498 = vrcp.pop %v497
    %v499 = vmul.f32 1.0, %v498
    %500 = vst [vmem:[%s10] sm:$0xff] %v499
    // Predicated region
    $region50: #{forward.1} parent=1 // pred_check
      _
    $region51: #{forward.1} parent=1 // pred_check_branch
      %502 = sbr.rel (0) target = $region53
    $region52: #{forward.1} parent=1 // pred_region
      %s504 = ssub.s32 128, 128
      %505 = vsyncadd [#allocation4], %s504
      %s507 = sshll.u32 [#allocation8], 4
      %s508 = int_to_ptr.vmem [resolvable:$true] %s507
      %510 = dma.vmem_to_hbm [thread:$0]  %s508, 128, %s9, [#allocation4]
    $region53: #{forward.1} parent=1 // pred_fallthru
      _
    // Predicated region
    $region54: #{forward.1} parent=1 // pred_check
      _
    $region55: #{forward.1} parent=1 // pred_check_branch
      %512 = sbr.rel (0) target = $region57
    $region56: #{forward.1} parent=1 // pred_region
      _
    $region57: #{forward.1} parent=1 // pred_fallthru
      _
    // Predicated region
    $region58: #{forward.1} parent=1 // pred_check
      _
    $region59: #{forward.1} parent=1 // pred_check_branch
      %514 = sbr.rel (0) target = $region61
    $region60: #{forward.1} parent=1 // pred_region
      %515 = dma.done [#allocation4], 128
    $region61: #{forward.1} parent=1 // pred_fallthru
      _
    // Predicated region
    $region62: #{forward.1} parent=1 // pred_check
      _
    $region63: #{forward.1} parent=1 // pred_check_branch
      %517 = sbr.rel (0) target = $region65
    $region64: #{forward.1} parent=1 // pred_region
      _
    $region65: #{forward.1} parent=1 // pred_fallthru
      _
    %518 = vsyncpa [#allocation3], 1
    %519 = vsyncpa [#allocation6], 1
    %520 = vsyncpa [#allocation4], 1

</llo_original>
